<compile_context>
chip_gen: v6e
topology: v6e:2x2x1
jax: 0.10.0
libtpu: 0.0.40
codegen_flags: <defaults>
</compile_context>

<pallas_src>
import functools
import math

import jax
import jax.numpy as jnp
from jax.experimental import pallas as pl
from jax.experimental.pallas import tpu as pltpu


# ---------------------------------------------------------------------------
# Kernels
# ---------------------------------------------------------------------------
def _noisy_linear_kernel_fullk(x_ref, wmu_ref, wsig_ref, ein_ref, eout_ref,
                               beff_ref, o_ref):
    """Full-K path: one reduction tile, no accumulator, direct store."""
    # w_eff[i, o] = wmu_t[i, o] + wsig_t[i, o] * eps_in[i] * eps_out[o]
    w_eff = wmu_ref[...] + (wsig_ref[...] * ein_ref[...]) * eout_ref[...]
    acc = jnp.dot(x_ref[...], w_eff, preferred_element_type=jnp.float32)
    o_ref[...] = (acc + beff_ref[...]).astype(o_ref.dtype)


def _noisy_linear_kernel_acc(x_ref, wmu_ref, wsig_ref, ein_ref, eout_ref,
                             beff_ref, o_ref, acc_ref):
    """Large-K path: (i, j, k) grid with an f32 VMEM accumulator."""
    k = pl.program_id(2)

    @pl.when(k == 0)
    def _init():
        acc_ref[...] = jnp.zeros_like(acc_ref)

    w_eff = wmu_ref[...] + (wsig_ref[...] * ein_ref[...]) * eout_ref[...]
    acc_ref[...] += jnp.dot(x_ref[...], w_eff,
                            preferred_element_type=jnp.float32)

    @pl.when(k == pl.num_programs(2) - 1)
    def _finalize():
        o_ref[...] = (acc_ref[...] + beff_ref[...]).astype(o_ref.dtype)


# ---------------------------------------------------------------------------
# Wrapper
# ---------------------------------------------------------------------------
def _round_up(x: int, m: int) -> int:
    return ((x + m - 1) // m) * m


def _pick_tile(dim: int, t_max: int, align: int):
    """Tile size <= t_max, multiple of `align`, padding kept within one tile."""
    dim_al = _round_up(dim, align)
    t_max_al = max(align, (t_max // align) * align)
    n_blocks = -(-dim_al // t_max_al)
    tile = _round_up(-(-dim_al // n_blocks), align)
    return tile, n_blocks * tile


@functools.partial(jax.jit,
                   static_argnames=("tm_max", "tn_max", "tk_max", "use_bf16"))
def noisy_linear(x, weight_mu_t, weight_sigma_t, eps_in, eps_out,
                 bias_mu, bias_sigma, bias_epsilon,
                 *, tm_max: int = 512, tn_max: int = 512, tk_max: int = 1024,
                 use_bf16: bool = False):
    """NoisyLinear forward.

    x:              (B, in_features)
    weight_mu_t:    (in_features, out_features)  -- TRANSPOSE of the PyTorch
    weight_sigma_t: (in_features, out_features)     nn.Linear (out, in) layout
    eps_in:         (in_features,)   factorized noise
    eps_out:        (out_features,)  (weight_epsilon = outer(eps_out, eps_in))
    bias_mu, bias_sigma, bias_epsilon: (out_features,)
    """
    B, in_f = x.shape
    in_f2, out_f = weight_mu_t.shape
    assert in_f == in_f2
    orig_dtype = x.dtype

    # ------------------------------------------------------------------ tiles
    tm, B_pad = _pick_tile(B, tm_max, 8)
    tn, out_pad = _pick_tile(out_f, tn_max, 128)
    tk, in_pad = _pick_tile(in_f, tk_max, 128)
    grid_k = in_pad // tk
    if grid_k == 1:
        tk = in_pad

    # Keep the parallel portion of the grid >= 2 blocks where possible so
    # v7x's two TensorCores both get work (no-op on v5e/v6e).
    if (B_pad // tm) * (out_pad // tn) < 2:
        if tn % 256 == 0:
            tn //= 2
        elif tm % 16 == 0:
            tm //= 2
    grid_i = B_pad // tm
    grid_j = out_pad // tn

    # ---------------------------------------------------------------- padding
    if (B_pad, in_pad) != (B, in_f):
        x = jnp.pad(x, ((0, B_pad - B), (0, in_pad - in_f)))
    if (in_pad, out_pad) != (in_f, out_f):
        pad_w = ((0, in_pad - in_f), (0, out_pad - out_f))
        weight_mu_t = jnp.pad(weight_mu_t, pad_w)
        weight_sigma_t = jnp.pad(weight_sigma_t, pad_w)
    if in_pad != in_f:
        eps_in = jnp.pad(eps_in, (0, in_pad - in_f))
    if out_pad != out_f:
        pad_o = (0, out_pad - out_f)
        eps_out = jnp.pad(eps_out, pad_o)
        bias_mu = jnp.pad(bias_mu, pad_o)
        bias_sigma = jnp.pad(bias_sigma, pad_o)
        bias_epsilon = jnp.pad(bias_epsilon, pad_o)

    # eps_in as a (in_pad, 1) column, eps_out as a (1, out_pad) row, so the
    # outer-product rebuild inside the kernel is plain VPU broadcasting.
    ein = eps_in.reshape(in_pad, 1)
    eout = eps_out.reshape(1, out_pad)
    # Effective bias is O(out) work -> precompute once in the wrapper (f32).
    b_eff = (bias_mu + bias_sigma * bias_epsilon).astype(jnp.float32)
    b_eff = b_eff.reshape(1, out_pad)

    # ------------------------------------------------------------------ dtype
    if use_bf16:
        cdt = jnp.bfloat16
        x = x.astype(cdt)
        weight_mu_t = weight_mu_t.astype(cdt)
        weight_sigma_t = weight_sigma_t.astype(cdt)
        ein = ein.astype(cdt)
        eout = eout.astype(cdt)
    stream_item = jnp.dtype(x.dtype).itemsize
    out_item = jnp.dtype(orig_dtype).itemsize

    # ----------------------------------------------------------- VMEM / cost
    per_buf = (tm * tk + 2 * tk * tn + tk + tn) * stream_item \
        + tn * 4 + tm * tn * out_item
    vmem_need = 2 * per_buf + (tm * tn * 4 if grid_k > 1 else 0)
    vmem_limit = int(min(max(2 * vmem_need, 32 * 1024 * 1024),
                         64 * 1024 * 1024))

    cost = pl.CostEstimate(
        flops=2 * B_pad * in_pad * out_pad,
        transcendentals=0,
        bytes_accessed=int(B_pad * in_pad * stream_item
                           + grid_i * 2 * in_pad * out_pad * stream_item
                           + in_pad * stream_item + out_pad * stream_item
                           + out_pad * 4
                           + B_pad * out_pad * out_item),
    )

    # ----------------------------------------------------------------- specs
    if grid_k == 1:
        kernel = _noisy_linear_kernel_fullk
        grid = (grid_i, grid_j)
        in_specs = [
            pl.BlockSpec((tm, tk), lambda i, j: (i, 0)),       # x
            pl.BlockSpec((tk, tn), lambda i, j: (0, j)),       # weight_mu_t
            pl.BlockSpec((tk, tn), lambda i, j: (0, j)),       # weight_sigma_t
            pl.BlockSpec((tk, 1), lambda i, j: (0, 0)),        # eps_in col
            pl.BlockSpec((1, tn), lambda i, j: (0, j)),        # eps_out row
            pl.BlockSpec((1, tn), lambda i, j: (0, j)),        # b_eff
        ]
        out_spec = pl.BlockSpec((tm, tn), lambda i, j: (i, j))
        scratch = []
        dim_sem = ("parallel", "parallel")
    else:
        kernel = _noisy_linear_kernel_acc
        grid = (grid_i, grid_j, grid_k)
        in_specs = [
            pl.BlockSpec((tm, tk), lambda i, j, k: (i, k)),    # x
            pl.BlockSpec((tk, tn), lambda i, j, k: (k, j)),    # weight_mu_t
            pl.BlockSpec((tk, tn), lambda i, j, k: (k, j)),    # weight_sigma_t
            pl.BlockSpec((tk, 1), lambda i, j, k: (k, 0)),     # eps_in col
            pl.BlockSpec((1, tn), lambda i, j, k: (0, j)),     # eps_out row
            pl.BlockSpec((1, tn), lambda i, j, k: (0, j)),     # b_eff
        ]
        out_spec = pl.BlockSpec((tm, tn), lambda i, j, k: (i, j))
        scratch = [pltpu.VMEM((tm, tn), jnp.float32)]
        dim_sem = ("parallel", "parallel", "arbitrary")

    out_padded = pl.pallas_call(
        kernel,
        out_shape=jax.ShapeDtypeStruct((B_pad, out_pad), orig_dtype),
        grid_spec=pltpu.PrefetchScalarGridSpec(
            num_scalar_prefetch=0,
            grid=grid,
            in_specs=in_specs,
            out_specs=out_spec,
            scratch_shapes=scratch,
        ),
        compiler_params=pltpu.CompilerParams(
            dimension_semantics=dim_sem,
            vmem_limit_bytes=vmem_limit,
        ),
        cost_estimate=cost,
    )(x, weight_mu_t, weight_sigma_t, ein, eout, b_eff)

    return out_padded[:B, :out_f]


# ---------------------------------------------------------------------------
# Parameter / noise construction (replicates NoisyLinear.__init__ + reset_noise)
# ---------------------------------------------------------------------------
def scale_noise(key, size):
    """Factorized gaussian noise: sign(x) * sqrt(|x|)."""
    x = jax.random.normal(key, (size,), dtype=jnp.float32)
    return jnp.sign(x) * jnp.sqrt(jnp.abs(x))


def init_noisy_linear_params(key, in_features, out_features, std_init=0.5):
    k_wmu, k_bmu, k_eps_in, k_eps_out = jax.random.split(key, 4)
    mu_range = 1.0 / math.sqrt(in_features)

    # Same distributions as reset_parameters(); stored PRE-TRANSPOSED to
    # (in, out) so the kernel never transposes the MXU RHS.
    weight_mu = jax.random.uniform(
        k_wmu, (out_features, in_features), jnp.float32, -mu_range, mu_range)
    weight_sigma = jnp.full((out_features, in_features),
                            std_init / math.sqrt(in_features), jnp.float32)
    bias_mu = jax.random.uniform(
        k_bmu, (out_features,), jnp.float32, -mu_range, mu_range)
    bias_sigma = jnp.full((out_features,),
                          std_init / math.sqrt(out_features), jnp.float32)

    # reset_noise(): keep the noise FACTORIZED (eps_in, eps_out); the kernel
    # rebuilds weight_epsilon = outer(eps_out, eps_in) per tile on the fly.
    eps_in = scale_noise(k_eps_in, in_features)
    eps_out = scale_noise(k_eps_out, out_features)
    bias_epsilon = eps_out

    return dict(weight_mu_t=weight_mu.T, weight_sigma_t=weight_sigma.T,
                eps_in=eps_in, eps_out=eps_out,
                bias_mu=bias_mu, bias_sigma=bias_sigma,
                bias_epsilon=bias_epsilon)


# ---------------------------------------------------------------------------
# Demo / correctness check
# ---------------------------------------------------------------------------
if __name__ == "__main__":
    in_features, out_features, batch = 32, 64, 8

    key = jax.random.PRNGKey(0)
    k_params, k_x = jax.random.split(key)
    params = init_noisy_linear_params(k_params, in_features, out_features)

    x = jax.random.normal(k_x, (batch, in_features), dtype=jnp.float32)

    # f32 path (strict check against the PyTorch-style reference).
    y = noisy_linear(x,
                     params["weight_mu_t"], params["weight_sigma_t"],
                     params["eps_in"], params["eps_out"],
                     params["bias_mu"], params["bias_sigma"],
                     params["bias_epsilon"])
    y = jax.block_until_ready(y)

    # Pure-JAX reference with the *materialized* weight_epsilon matrix,
    # exactly as the PyTorch module's forward computes it.
    weight_mu = params["weight_mu_t"].T
    weight_sigma = params["weight_sigma_t"].T
    weight_epsilon = jnp.outer(params["eps_out"], params["eps_in"])
    w_eff = weight_mu + weight_sigma * weight_epsilon
    b_eff = params["bias_mu"] + params["bias_sigma"] * params["bias_epsilon"]
    y_ref = x @ w_eff.T + b_eff

    assert y.shape == (batch, out_features)
    assert jnp.allclose(y, y_ref, atol=1e-5, rtol=1e-5)

    # bf16 streaming path (looser tolerance: bf16 weight/activation quant).
    y_bf16 = noisy_linear(x,
                          params["weight_mu_t"], params["weight_sigma_t"],
                          params["eps_in"], params["eps_out"],
                          params["bias_mu"], params["bias_sigma"],
                          params["bias_epsilon"],
                          use_bf16=True)
    y_bf16 = jax.block_until_ready(y_bf16)
    assert y_bf16.shape == (batch, out_features)
    assert jnp.allclose(y_bf16, y_ref, atol=5e-2, rtol=5e-2)

    print("KERNEL_OK")
</pallas_src>

<mosaic_0001>
module attributes {stable_mosaic.version = 11 : i64} {
  func.func @_noisy_linear_kernel_fullk(%arg0: i32, %arg1: i32, %arg2: memref<8x128xf32, #tpu.memory_space<vmem>>, %arg3: memref<128x128xf32, #tpu.memory_space<vmem>>, %arg4: memref<128x128xf32, #tpu.memory_space<vmem>>, %arg5: memref<128x1xf32, #tpu.memory_space<vmem>>, %arg6: memref<1x128xf32, #tpu.memory_space<vmem>>, %arg7: memref<1x128xf32, #tpu.memory_space<vmem>>, %arg8: memref<8x128xf32, #tpu.memory_space<vmem>>) attributes {dimension_semantics = [#tpu.dimension_semantics<parallel>, #tpu.dimension_semantics<parallel>], iteration_bounds = array<i64: 1, 1>, scalar_prefetch = 0 : i64, scratch_operands = 0 : i64, tpu.core_type = #tpu.core_type<tc>, window_params = [{transform_indices = @transform_0, window_bounds = array<i64: 8, 128>}, {transform_indices = @transform_1, window_bounds = array<i64: 128, 128>}, {transform_indices = @transform_2, window_bounds = array<i64: 128, 128>}, {pipeline_mode = #tpu.pipeline_mode<synchronous>, transform_indices = @transform_3, window_bounds = array<i64: 128, 1>}, {transform_indices = @transform_4, window_bounds = array<i64: 1, 128>}, {transform_indices = @transform_5, window_bounds = array<i64: 1, 128>}, {transform_indices = @transform_6, window_bounds = array<i64: 8, 128>}]} {
    %c0 = arith.constant 0 : index
    %c0_0 = arith.constant 0 : index
    %0 = vector.load %arg3[%c0, %c0_0] : memref<128x128xf32, #tpu.memory_space<vmem>>, vector<128x128xf32>
    %c0_1 = arith.constant 0 : index
    %c0_2 = arith.constant 0 : index
    %1 = vector.load %arg4[%c0_1, %c0_2] : memref<128x128xf32, #tpu.memory_space<vmem>>, vector<128x128xf32>
    %c0_3 = arith.constant 0 : index
    %c0_4 = arith.constant 0 : index
    %2 = vector.load %arg5[%c0_3, %c0_4] : memref<128x1xf32, #tpu.memory_space<vmem>>, vector<128x1xf32>
    %3 = vector.broadcast %2 : vector<128x1xf32> to vector<128x128xf32>
    %4 = arith.mulf %1, %3 : vector<128x128xf32>
    %c0_5 = arith.constant 0 : index
    %c0_6 = arith.constant 0 : index
    %5 = vector.load %arg6[%c0_5, %c0_6] : memref<1x128xf32, #tpu.memory_space<vmem>>, vector<1x128xf32>
    %6 = vector.broadcast %5 : vector<1x128xf32> to vector<128x128xf32>
    %7 = arith.mulf %4, %6 : vector<128x128xf32>
    %8 = arith.addf %0, %7 : vector<128x128xf32>
    %c0_7 = arith.constant 0 : index
    %c0_8 = arith.constant 0 : index
    %9 = vector.load %arg2[%c0_7, %c0_8] : memref<8x128xf32, #tpu.memory_space<vmem>>, vector<8x128xf32>
    %cst = arith.constant dense<0.000000e+00> : vector<8x128xf32>
    %10 = tpu.matmul %9, %8, %cst {dimension_numbers = #tpu.dot_dimension_numbers<[1], [0], [0], [1], [0, 0, 1, 1], [], []>} : vector<8x128xf32>, vector<128x128xf32>, vector<8x128xf32> -> vector<8x128xf32>
    %c0_9 = arith.constant 0 : index
    %c0_10 = arith.constant 0 : index
    %11 = vector.load %arg7[%c0_9, %c0_10] : memref<1x128xf32, #tpu.memory_space<vmem>>, vector<1x128xf32>
    %12 = vector.broadcast %11 : vector<1x128xf32> to vector<8x128xf32>
    %13 = arith.addf %10, %12 : vector<8x128xf32>
    %c0_11 = arith.constant 0 : index
    %c0_12 = arith.constant 0 : index
    %14 = vector.load %arg8[%c0_11, %c0_12] : memref<8x128xf32, #tpu.memory_space<vmem>>, vector<8x128xf32>
    tpu.vector_store %arg8[%c0_11, %c0_12], %13 {strides = array<i32>} : memref<8x128xf32, #tpu.memory_space<vmem>>, vector<8x128xf32>,
    return
  }
  func.func @transform_0(%arg0: i32, %arg1: i32) -> (i32, i32) {
    %c0_i32 = arith.constant 0 : i32
    %c0_i32_0 = arith.constant 0 : i32
    return %arg0, %c0_i32 : i32, i32
  }
  func.func @transform_1(%arg0: i32, %arg1: i32) -> (i32, i32) {
    %c0_i32 = arith.constant 0 : i32
    %c0_i32_0 = arith.constant 0 : i32
    return %c0_i32, %arg1 : i32, i32
  }
  func.func @transform_2(%arg0: i32, %arg1: i32) -> (i32, i32) {
    %c0_i32 = arith.constant 0 : i32
    %c0_i32_0 = arith.constant 0 : i32
    return %c0_i32, %arg1 : i32, i32
  }
  func.func @transform_3(%arg0: i32, %arg1: i32) -> (i32, i32) {
    %c0_i32 = arith.constant 0 : i32
    %c0_i32_0 = arith.constant 0 : i32
    %c0_i32_1 = arith.constant 0 : i32
    return %c0_i32, %c0_i32_0 : i32, i32
  }
  func.func @transform_4(%arg0: i32, %arg1: i32) -> (i32, i32) {
    %c0_i32 = arith.constant 0 : i32
    %c0_i32_0 = arith.constant 0 : i32
    return %c0_i32, %arg1 : i32, i32
  }
  func.func @transform_5(%arg0: i32, %arg1: i32) -> (i32, i32) {
    %c0_i32 = arith.constant 0 : i32
    %c0_i32_0 = arith.constant 0 : i32
    return %c0_i32, %arg1 : i32, i32
  }
  func.func @transform_6(%arg0: i32, %arg1: i32) -> (i32, i32) {
    %c0_i32 = arith.constant 0 : i32
    return %arg0, %arg1 : i32, i32
  }
}

</mosaic_0001>

<llo_original>
// kernel: noisy_linear.1
$region0: #{noisy_linear.1}
  #allocation0 [shape = 'u32[]', space=smem, size = 0x4, offset = 0x4, fixed_abs, tag = 'smem constant byte address 0x4 - core index']
  #allocation1 [shape = 'u32[144,128]{1,0:T(1,128)}', space=vmem, size = 0x12000, scoped, tag = 'internal scratch']
  %s0 = inlined_call_operand.vmem [shape: f32[8,128], index: 0, kind: input, shape index: {}]
  %s1 = inlined_call_operand.vmem [shape: f32[128,128], index: 1, kind: input, shape index: {}]
  %s2 = inlined_call_operand.vmem [shape: f32[128,128], index: 2, kind: input, shape index: {}]
  %s3 = inlined_call_operand.vmem [shape: f32[128,1], index: 3, kind: input, shape index: {}]
  %s4 = inlined_call_operand.vmem [shape: f32[1,128], index: 4, kind: input, shape index: {}]
  %s5 = inlined_call_operand.vmem [shape: f32[1,128], index: 5, kind: input, shape index: {}]
  %s6 = inlined_call_operand.hbm [shape: f32[8,128], index: 6, kind: output, shape index: {}]
  %s7 = sld [smem:[#allocation0]]
  $region34: #{noisy_linear.1} parent=0
    _
  %s9 = ssub.s32 1, %s7
  %s10 = scalar_select 0, %s9, %s7
  $region1: #{noisy_linear.1} parent=0
    #allocation2 [shape = 'u8[4096]{0}', space=vmem, size = 0x1000, scoped, tag = 'output window, operand 0, single buffered']
    #allocation3 [shape = 's32[1]{0}', space=sflag, size = 0x4, scoped, tag = 'scoped memory for noisy_linear.1']
    %11 = vsyncpa [#allocation3], 0
    // Predicated region
    $region2: #{noisy_linear.1} parent=1 // pred_check
      _
    $region3: #{noisy_linear.1} parent=1 // pred_check_branch
      %13 = sbr.rel (0) target = $region5
    $region4: #{noisy_linear.1} parent=1 // pred_region
      _
    $region5: #{noisy_linear.1} parent=1 // pred_fallthru
      _
    // Predicated region
    $region6: #{noisy_linear.1} parent=1 // pred_check
      _
    $region7: #{noisy_linear.1} parent=1 // pred_check_branch
      %15 = sbr.rel (0) target = $region9
    $region8: #{noisy_linear.1} parent=1 // pred_region
      _
    $region9: #{noisy_linear.1} parent=1 // pred_fallthru
      _
    // Predicated region
    $region10: #{noisy_linear.1} parent=1 // pred_check
      _
    $region11: #{noisy_linear.1} parent=1 // pred_check_branch
      %17 = sbr.rel (0) target = $region13
    $region12: #{noisy_linear.1} parent=1 // pred_region
      _
    $region13: #{noisy_linear.1} parent=1 // pred_fallthru
      _
    // Predicated region
    $region14: #{noisy_linear.1} parent=1 // pred_check
      _
    $region15: #{noisy_linear.1} parent=1 // pred_check_branch
      %19 = sbr.rel (0) target = $region17
    $region16: #{noisy_linear.1} parent=1 // pred_region
      _
    $region17: #{noisy_linear.1} parent=1 // pred_fallthru
      _
    // Predicated region
    $region18: #{noisy_linear.1} parent=1 // pred_check
      _
    $region19: #{noisy_linear.1} parent=1 // pred_check_branch
      %21 = sbr.rel (0) target = $region21
    $region20: #{noisy_linear.1} parent=1 // pred_region
      _
    $region21: #{noisy_linear.1} parent=1 // pred_fallthru
      _
    // Predicated region
    $region22: #{noisy_linear.1} parent=1 // pred_check
      _
    $region23: #{noisy_linear.1} parent=1 // pred_check_branch
      %23 = sbr.rel (0) target = $region25
    $region24: #{noisy_linear.1} parent=1 // pred_region
      _
    $region25: #{noisy_linear.1} parent=1 // pred_fallthru
      _
    %v24 = vld [vmem:[%s1] sm:$0xff]
    %v25 = vld [vmem:[%s1 + $0x8] sm:$0xff]
    %v26 = vld [vmem:[%s1 + $0x10] sm:$0xff]
    %v27 = vld [vmem:[%s1 + $0x18] sm:$0xff]
    %v28 = vld [vmem:[%s1 + $0x20] sm:$0xff]
    %v29 = vld [vmem:[%s1 + $0x28] sm:$0xff]
    %v30 = vld [vmem:[%s1 + $0x30] sm:$0xff]
    %v31 = vld [vmem:[%s1 + $0x38] sm:$0xff]
    %v32 = vld [vmem:[%s1 + $0x40] sm:$0xff]
    %v33 = vld [vmem:[%s1 + $0x48] sm:$0xff]
    %v34 = vld [vmem:[%s1 + $0x50] sm:$0xff]
    %v35 = vld [vmem:[%s1 + $0x58] sm:$0xff]
    %v36 = vld [vmem:[%s1 + $0x60] sm:$0xff]
    %v37 = vld [vmem:[%s1 + $0x68] sm:$0xff]
    %v38 = vld [vmem:[%s1 + $0x70] sm:$0xff]
    %v39 = vld [vmem:[%s1 + $0x78] sm:$0xff]
    %v40 = vld [vmem:[%s2] sm:$0xff]
    %v41 = vld [vmem:[%s2 + $0x8] sm:$0xff]
    %v42 = vld [vmem:[%s2 + $0x10] sm:$0xff]
    %v43 = vld [vmem:[%s2 + $0x18] sm:$0xff]
    %v44 = vld [vmem:[%s2 + $0x20] sm:$0xff]
    %v45 = vld [vmem:[%s2 + $0x28] sm:$0xff]
    %v46 = vld [vmem:[%s2 + $0x30] sm:$0xff]
    %v47 = vld [vmem:[%s2 + $0x38] sm:$0xff]
    %v48 = vld [vmem:[%s2 + $0x40] sm:$0xff]
    %v49 = vld [vmem:[%s2 + $0x48] sm:$0xff]
    %v50 = vld [vmem:[%s2 + $0x50] sm:$0xff]
    %v51 = vld [vmem:[%s2 + $0x58] sm:$0xff]
    %v52 = vld [vmem:[%s2 + $0x60] sm:$0xff]
    %v53 = vld [vmem:[%s2 + $0x68] sm:$0xff]
    %v54 = vld [vmem:[%s2 + $0x70] sm:$0xff]
    %v55 = vld [vmem:[%s2 + $0x78] sm:$0xff]
    %v56 = vld [vmem:[%s3] sm:$0xff]
    %v57 = vld [vmem:[%s3 + $0x8] sm:$0xff]
    %v58 = vld [vmem:[%s3 + $0x10] sm:$0xff]
    %v59 = vld [vmem:[%s3 + $0x18] sm:$0xff]
    %v60 = vld [vmem:[%s3 + $0x20] sm:$0xff]
    %v61 = vld [vmem:[%s3 + $0x28] sm:$0xff]
    %v62 = vld [vmem:[%s3 + $0x30] sm:$0xff]
    %v63 = vld [vmem:[%s3 + $0x38] sm:$0xff]
    %v64 = vld [vmem:[%s3 + $0x40] sm:$0xff]
    %v65 = vld [vmem:[%s3 + $0x48] sm:$0xff]
    %v66 = vld [vmem:[%s3 + $0x50] sm:$0xff]
    %v67 = vld [vmem:[%s3 + $0x58] sm:$0xff]
    %v68 = vld [vmem:[%s3 + $0x60] sm:$0xff]
    %v69 = vld [vmem:[%s3 + $0x68] sm:$0xff]
    %v70 = vld [vmem:[%s3 + $0x70] sm:$0xff]
    %v71 = vld [vmem:[%s3 + $0x78] sm:$0xff]
    %73 = vset.pattern.permute.xlu0 0
    %74 = vperm.xlu0 %73, %v56
    %v75 = vpop.permute.xlu0 %74
    %78 = vset.pattern.permute.xlu0 0
    %79 = vperm.xlu0 %78, %v57
    %v80 = vpop.permute.xlu0 %79
    %83 = vset.pattern.permute.xlu0 0
    %84 = vperm.xlu0 %83, %v58
    %v85 = vpop.permute.xlu0 %84
    %88 = vset.pattern.permute.xlu0 0
    %89 = vperm.xlu0 %88, %v59
    %v90 = vpop.permute.xlu0 %89
    %93 = vset.pattern.permute.xlu0 0
    %94 = vperm.xlu0 %93, %v60
    %v95 = vpop.permute.xlu0 %94
    %98 = vset.pattern.permute.xlu0 0
    %99 = vperm.xlu0 %98, %v61
    %v100 = vpop.permute.xlu0 %99
    %103 = vset.pattern.permute.xlu0 0
    %104 = vperm.xlu0 %103, %v62
    %v105 = vpop.permute.xlu0 %104
    %108 = vset.pattern.permute.xlu0 0
    %109 = vperm.xlu0 %108, %v63
    %v110 = vpop.permute.xlu0 %109
    %113 = vset.pattern.permute.xlu0 0
    %114 = vperm.xlu0 %113, %v64
    %v115 = vpop.permute.xlu0 %114
    %118 = vset.pattern.permute.xlu0 0
    %119 = vperm.xlu0 %118, %v65
    %v120 = vpop.permute.xlu0 %119
    %123 = vset.pattern.permute.xlu0 0
    %124 = vperm.xlu0 %123, %v66
    %v125 = vpop.permute.xlu0 %124
    %128 = vset.pattern.permute.xlu0 0
    %129 = vperm.xlu0 %128, %v67
    %v130 = vpop.permute.xlu0 %129
    %133 = vset.pattern.permute.xlu0 0
    %134 = vperm.xlu0 %133, %v68
    %v135 = vpop.permute.xlu0 %134
    %138 = vset.pattern.permute.xlu0 0
    %139 = vperm.xlu0 %138, %v69
    %v140 = vpop.permute.xlu0 %139
    %143 = vset.pattern.permute.xlu0 0
    %144 = vperm.xlu0 %143, %v70
    %v145 = vpop.permute.xlu0 %144
    %148 = vset.pattern.permute.xlu0 0
    %149 = vperm.xlu0 %148, %v71
    %v150 = vpop.permute.xlu0 %149
    %v152 = vmul.f32 %v40, %v75
    %v153 = vmul.f32 %v41, %v80
    %v154 = vmul.f32 %v42, %v85
    %v155 = vmul.f32 %v43, %v90
    %v156 = vmul.f32 %v44, %v95
    %v157 = vmul.f32 %v45, %v100
    %v158 = vmul.f32 %v46, %v105
    %v159 = vmul.f32 %v47, %v110
    %v160 = vmul.f32 %v48, %v115
    %v161 = vmul.f32 %v49, %v120
    %v162 = vmul.f32 %v50, %v125
    %v163 = vmul.f32 %v51, %v130
    %v164 = vmul.f32 %v52, %v135
    %v165 = vmul.f32 %v53, %v140
    %v166 = vmul.f32 %v54, %v145
    %v167 = vmul.f32 %v55, %v150
    %v168 = vld [vmem:[%s4] sm:$0x1]
    %v170 = vlaneseq
    %v171 = vshrl.u32 %v170, 7
    %v172 = vsub.s32 0, %v171
    %v173 = vrot.slane %v168, %v172
    %v175 = vmul.f32 %v152, %v173
    %v176 = vmul.f32 %v153, %v173
    %v177 = vmul.f32 %v154, %v173
    %v178 = vmul.f32 %v155, %v173
    %v179 = vmul.f32 %v156, %v173
    %v180 = vmul.f32 %v157, %v173
    %v181 = vmul.f32 %v158, %v173
    %v182 = vmul.f32 %v159, %v173
    %v183 = vmul.f32 %v160, %v173
    %v184 = vmul.f32 %v161, %v173
    %v185 = vmul.f32 %v162, %v173
    %v186 = vmul.f32 %v163, %v173
    %v187 = vmul.f32 %v164, %v173
    %v188 = vmul.f32 %v165, %v173
    %v189 = vmul.f32 %v166, %v173
    %v190 = vmul.f32 %v167, %v173
    %v191 = vadd.f32 %v24, %v175
    %v192 = vadd.f32 %v25, %v176
    %v193 = vadd.f32 %v26, %v177
    %v194 = vadd.f32 %v27, %v178
    %v195 = vadd.f32 %v28, %v179
    %v196 = vadd.f32 %v29, %v180
    %v197 = vadd.f32 %v30, %v181
    %v198 = vadd.f32 %v31, %v182
    %v199 = vadd.f32 %v32, %v183
    %v200 = vadd.f32 %v33, %v184
    %v201 = vadd.f32 %v34, %v185
    %v202 = vadd.f32 %v35, %v186
    %v203 = vadd.f32 %v36, %v187
    %v204 = vadd.f32 %v37, %v188
    %v205 = vadd.f32 %v38, %v189
    %v206 = vadd.f32 %v39, %v190
    %v207 = vld [vmem:[%s0] sm:$0xff]
    %v208 = vld [vmem:[%s5] sm:$0x1]
    %v210 = vlaneseq
    %v211 = vshrl.u32 %v210, 7
    %v212 = vsub.s32 0, %v211
    %v213 = vrot.slane %v208, %v212
    %215 = vmatprep.subr.mxu0 0.0
    %216 = vmatpush1.msra.mxu0 %v206
    %217 = vmatprep.subr.mxu0 0.0
    %218 = vmatpush1.msra.mxu0 %v205
    %219 = vmatprep.subr.mxu0 0.0
    %220 = vmatpush1.msra.mxu0 %v204
    %221 = vmatprep.subr.mxu0 0.0
    %222 = vmatpush1.msra.mxu0 %v203
    %223 = vmatprep.subr.mxu0 0.0
    %224 = vmatpush1.msra.mxu0 %v202
    %225 = vmatprep.subr.mxu0 0.0
    %226 = vmatpush1.msra.mxu0 %v201
    %227 = vmatprep.subr.mxu0 0.0
    %228 = vmatpush1.msra.mxu0 %v200
    %229 = vmatprep.subr.mxu0 0.0
    %230 = vmatpush1.msra.mxu0 %v199
    %231 = vmatprep.subr.mxu0 0.0
    %232 = vmatpush1.msra.mxu0 %v198
    %233 = vmatprep.subr.mxu0 0.0
    %234 = vmatpush1.msra.mxu0 %v197
    %235 = vmatprep.subr.mxu0 0.0
    %236 = vmatpush1.msra.mxu0 %v196
    %237 = vmatprep.subr.mxu0 0.0
    %238 = vmatpush1.msra.mxu0 %v195
    %239 = vmatprep.subr.mxu0 0.0
    %240 = vmatpush1.msra.mxu0 %v194
    %241 = vmatprep.subr.mxu0 0.0
    %242 = vmatpush1.msra.mxu0 %v193
    %243 = vmatprep.subr.mxu0 0.0
    %244 = vmatpush1.msra.mxu0 %v192
    %245 = vmatprep.subr.mxu0 0.0
    %246 = vmatpush1.msra.mxu0 %v191
    %247 = vmatprep.subr.mxu0 0.0
    %248 = vmatpush2.msra.mxu0 0.0
    %249 = vmatprep.subr.mxu0 0.0
    %250 = vmatpush2.msra.mxu0 0.0
    %251 = vmatprep.subr.mxu0 0.0
    %252 = vmatpush2.msra.mxu0 0.0
    %253 = vmatprep.subr.mxu0 0.0
    %254 = vmatpush2.msra.mxu0 0.0
    %255 = vmatprep.subr.mxu0 0.0
    %256 = vmatpush2.msra.mxu0 0.0
    %257 = vmatprep.subr.mxu0 0.0
    %258 = vmatpush2.msra.mxu0 0.0
    %259 = vmatprep.subr.mxu0 0.0
    %260 = vmatpush2.msra.mxu0 0.0
    %261 = vmatprep.subr.mxu0 0.0
    %262 = vmatpush2.msra.mxu0 0.0
    %263 = vmatprep.subr.mxu0 0.0
    %264 = vmatpush2.msra.mxu0 0.0
    %265 = vmatprep.subr.mxu0 0.0
    %266 = vmatpush2.msra.mxu0 0.0
    %267 = vmatprep.subr.mxu0 0.0
    %268 = vmatpush2.msra.mxu0 0.0
    %269 = vmatprep.subr.mxu0 0.0
    %270 = vmatpush2.msra.mxu0 0.0
    %271 = vmatprep.subr.mxu0 0.0
    %272 = vmatpush2.msra.mxu0 0.0
    %273 = vmatprep.subr.mxu0 0.0
    %274 = vmatpush2.msra.mxu0 0.0
    %275 = vmatprep.subr.mxu0 0.0
    %276 = vmatpush2.msra.mxu0 0.0
    %277 = vmatprep.subr.mxu0 0.0
    %278 = vmatpush2.msra.mxu0 0.0
    %279 = vmatprep.mubr.f32.mxu0 0.0
    %280 = vmatmul.mubr.f32.gmra.mxu0 %v207
    %v281 = vpop.f32.mrf.mxu0
    %v282 = vadd.f32 %v213, %v281
    %v283 = vpop.f32.mrf.mxu0
    %284 = vdwg.mxu0
    %285 = vst [vmem:[#allocation2] sm:$0xff] %v282
    // Predicated region
    $region26: #{noisy_linear.1} parent=1 // pred_check
      _
    $region27: #{noisy_linear.1} parent=1 // pred_check_branch
      %287 = sbr.rel (0) target = $region29
    $region28: #{noisy_linear.1} parent=1 // pred_region
      %s289 = ssub.s32 128, 128
      %290 = vsyncadd [#allocation3], %s289
      %s292 = sshll.u32 [#allocation2], 4
      %s293 = int_to_ptr.vmem [resolvable:$true] %s292
      %295 = dma.vmem_to_hbm [thread:$0]  %s293, 128, %s6, [#allocation3]
    $region29: #{noisy_linear.1} parent=1 // pred_fallthru
      _
    // Predicated region
    $region30: #{noisy_linear.1} parent=1 // pred_check
      _
    $region31: #{noisy_linear.1} parent=1 // pred_check_branch
      %297 = sbr.rel (0) target = $region33
    $region32: #{noisy_linear.1} parent=1 // pred_region
      %298 = dma.done [#allocation3], 128
    $region33: #{noisy_linear.1} parent=1 // pred_fallthru
      _
    %299 = vsyncpa [#allocation3], 1

</llo_original>
